<compile_context>
chip_gen: v5e
topology: v5e:2x2
jax: 0.10.0
libtpu: 0.0.40
codegen_flags: <defaults>
</compile_context>

<pallas_src>
import jax
import jax.numpy as jnp
from jax.experimental import pallas as pl
from jax.experimental.pallas import tpu as pltpu

NEG_SLOPE = 0.01  # nn.LeakyReLU default negative_slope


def _pick_bb(B):
    """Largest batch-tile (<=16) dividing B that still leaves >=2 grid steps."""
    for bb in (16, 8, 4, 2, 1):
        if B % bb == 0 and B // bb >= 2:
            return bb
    return B  # B == 1 -> single grid step


# ----------------------------------------------------------------------------
# Pallas kernel: fused  LeakyReLU(z @ W1 + b1)  ->  ReLU(W2 @ h1 + b2)
# (second GEMM contracts over the old sequence axis, which implements the
#  Permute -> Linear(old_seq_len, seq_len) -> Permute chain without transposes)
# ----------------------------------------------------------------------------
def _decoder_kernel(z_ref, w1_ref, b1_ref, w2_ref, b2_ref, o_ref):
    BB, T_old, K = z_ref.shape
    D1 = w1_ref.shape[1]

    # Stage 1: h1 = LeakyReLU(z @ W1 + b1)      -> (BB*T_old, D1), fp32
    # (merging the leading dims is layout-free: K stays on the lane axis)
    z = z_ref[...].astype(jnp.bfloat16).reshape(BB * T_old, K)
    h1 = jnp.dot(z, w1_ref[...], preferred_element_type=jnp.float32)
    h1 = h1 + b1_ref[...]                                  # (1, D1) broadcast
    h1 = jnp.where(h1 > 0.0, h1, NEG_SLOPE * h1)
    # TODO(synk): nn.Dropout omitted (inference semantics -> identity).

    # Stage 2: out[b] = ReLU(W2 @ h1[b] + b2)   -> (BB, T_new, D1), fp32
    h1_3d = h1.astype(jnp.bfloat16).reshape(BB, T_old, D1)
    w2b = jnp.broadcast_to(w2_ref[...], (BB,) + w2_ref.shape)   # tiny, one-time
    out = jnp.einsum("bst,btn->bsn", w2b, h1_3d,
                     preferred_element_type=jnp.float32)
    out = out + b2_ref[...]                                 # (T_new, 1) broadcast
    o_ref[...] = jnp.maximum(out, 0.0).astype(o_ref.dtype)


# ----------------------------------------------------------------------------
# One-time parameter preparation (hoisted out of the hot path)
# ----------------------------------------------------------------------------
def prepare_params(params):
    w1, b1 = params["w1"], params["b1"]        # (feat, input_dim), (feat,)
    w2, b2 = params["w2"], params["b2"]        # (seq_len, old_seq_len), (seq_len,)
    return {
        "w1t": jnp.asarray(w1).T.astype(jnp.bfloat16),            # (K, D1)
        "b1r": jnp.asarray(b1, jnp.float32).reshape(1, -1),       # (1, D1)
        "w2":  jnp.asarray(w2).astype(jnp.bfloat16),              # (T_new, T_old)
        "b2r": jnp.asarray(b2, jnp.float32).reshape(-1, 1),       # (T_new, 1)
    }


# ----------------------------------------------------------------------------
# Wrapper: single pallas_call, no extra HBM passes
# ----------------------------------------------------------------------------
def timeseries_decoder_forward(prepared, z):
    """z: (B, old_seq_len, input_dim) fp32 -> (B, seq_len, feat_dim) fp32."""
    w1t, b1r, w2, b2r = prepared["w1t"], prepared["b1r"], prepared["w2"], prepared["b2r"]
    B, T_old, K = z.shape
    D1 = w1t.shape[1]
    T_new, T_old_w = w2.shape
    assert T_old_w == T_old and w1t.shape[0] == K

    BB = _pick_bb(B)
    grid = (B // BB,)

    flops = 2 * B * (T_old * K * D1 + T_new * T_old * D1)
    bytes_accessed = (z.size * 4 + w1t.size * 2 + w2.size * 2
                      + b1r.size * 4 + b2r.size * 4 + B * T_new * D1 * 4)

    out = pl.pallas_call(
        _decoder_kernel,
        out_shape=jax.ShapeDtypeStruct((B, T_new, D1), jnp.float32),
        grid=grid,
        in_specs=[
            pl.BlockSpec((BB, T_old, K), lambda i: (i, 0, 0)),   # z tile (fp32)
            pl.BlockSpec((K, D1), lambda i: (0, 0)),             # W1^T (resident)
            pl.BlockSpec((1, D1), lambda i: (0, 0)),             # b1
            pl.BlockSpec((T_new, T_old), lambda i: (0, 0)),      # W2 (resident)
            pl.BlockSpec((T_new, 1), lambda i: (0, 0)),          # b2
        ],
        out_specs=pl.BlockSpec((BB, T_new, D1), lambda i: (i, 0, 0)),
        compiler_params=pltpu.CompilerParams(
            dimension_semantics=("parallel",),      # >=2 steps -> both v7x TCs busy
            vmem_limit_bytes=32 * 1024 * 1024),
        cost_estimate=pl.CostEstimate(
            flops=flops, transcendentals=0, bytes_accessed=bytes_accessed),
    )(z, w1t, b1r, w2, b2r)

    return out


# ----------------------------------------------------------------------------
# Parameter init (Kaiming-normal fan_in, leaky_relu gain; biases zero)
# ----------------------------------------------------------------------------
def init_params(key, input_dim, output_shape, old_seq_len=64):
    seq_len, feat_dim = output_shape
    gain = 2.0 ** 0.5                         # calculate_gain('leaky_relu', a=0)
    k1, k2 = jax.random.split(key)
    w1 = jax.random.normal(k1, (feat_dim, input_dim), jnp.float32) * (gain / (input_dim ** 0.5))
    b1 = jnp.zeros((feat_dim,), jnp.float32)
    w2 = jax.random.normal(k2, (seq_len, old_seq_len), jnp.float32) * (gain / (old_seq_len ** 0.5))
    b2 = jnp.zeros((seq_len,), jnp.float32)
    return {"w1": w1, "b1": b1, "w2": w2, "b2": b2}


# ----------------------------------------------------------------------------
# Pure-JAX fp32 reference (mirrors the PyTorch module layer-by-layer)
# ----------------------------------------------------------------------------
def reference_forward(params, z):
    h = z @ params["w1"].T + params["b1"]           # Linear(input_dim, feat)
    h = jnp.where(h > 0.0, h, NEG_SLOPE * h)        # LeakyReLU  (Dropout = id)
    h = jnp.transpose(h, (0, 2, 1))                 # Permuter((0,2,1))
    h = h @ params["w2"].T + params["b2"]           # Linear(old_seq_len, seq_len)
    h = jnp.maximum(h, 0.0)                         # ReLU       (Dropout = id)
    return jnp.transpose(h, (0, 2, 1))              # Permuter((0,2,1))
    # TODO(synk): the per-layer torch.isnan debug print has no kernel equivalent.


if __name__ == "__main__":
    B = 2
    input_dim = 32
    old_seq_len = 64
    output_shape = (8, 32)                    # (seq_len, feature_dim)

    key = jax.random.PRNGKey(0)
    key, kz = jax.random.split(key)
    z = jax.random.normal(kz, (B, old_seq_len, input_dim), jnp.float32)

    params = init_params(key, input_dim, output_shape, old_seq_len)
    prepared = prepare_params(params)         # one-time, outside the hot path

    out = timeseries_decoder_forward(prepared, z)
    out = jax.block_until_ready(out)

    assert out.shape == (B, output_shape[0], output_shape[1]), out.shape
    assert bool(jnp.all(jnp.isfinite(out)))

    ref = reference_forward(params, z)
    max_err = float(jnp.max(jnp.abs(out - ref)))
    assert bool(jnp.allclose(out, ref, rtol=5e-2, atol=1e-1)), max_err

    print("KERNEL_OK")
</pallas_src>

<mosaic_0001>
module attributes {stable_mosaic.version = 11 : i64} {
  func.func @_decoder_kernel(%arg0: i32, %arg1: memref<1x64x32xf32, #tpu.memory_space<vmem>>, %arg2: memref<32x32xbf16, #tpu.memory_space<vmem>>, %arg3: memref<1x32xf32, #tpu.memory_space<vmem>>, %arg4: memref<8x64xbf16, #tpu.memory_space<vmem>>, %arg5: memref<8x1xf32, #tpu.memory_space<vmem>>, %arg6: memref<1x8x32xf32, #tpu.memory_space<vmem>>) attributes {dimension_semantics = [#tpu.dimension_semantics<parallel>], iteration_bounds = array<i64: 2>, scalar_prefetch = 0 : i64, scratch_operands = 0 : i64, tpu.core_type = #tpu.core_type<tc>, window_params = [{transform_indices = @transform_0, window_bounds = array<i64: 1, 64, 32>}, {pipeline_mode = #tpu.pipeline_mode<synchronous>, transform_indices = @transform_1, window_bounds = array<i64: 32, 32>}, {pipeline_mode = #tpu.pipeline_mode<synchronous>, transform_indices = @transform_2, window_bounds = array<i64: 1, 32>}, {pipeline_mode = #tpu.pipeline_mode<synchronous>, transform_indices = @transform_3, window_bounds = array<i64: 8, 64>}, {pipeline_mode = #tpu.pipeline_mode<synchronous>, transform_indices = @transform_4, window_bounds = array<i64: 8, 1>}, {transform_indices = @transform_5, window_bounds = array<i64: 1, 8, 32>}]} {
    %c0 = arith.constant 0 : index
    %c0_0 = arith.constant 0 : index
    %c0_1 = arith.constant 0 : index
    %0 = vector.load %arg1[%c0, %c0_0, %c0_1] : memref<1x64x32xf32, #tpu.memory_space<vmem>>, vector<1x64x32xf32>
    %1 = arith.truncf %0 : vector<1x64x32xf32> to vector<1x64x32xbf16>
    %2 = vector.shape_cast %1 : vector<1x64x32xbf16> to vector<64x32xbf16>
    %c0_2 = arith.constant 0 : index
    %c0_3 = arith.constant 0 : index
    %3 = vector.load %arg2[%c0_2, %c0_3] : memref<32x32xbf16, #tpu.memory_space<vmem>>, vector<32x32xbf16>
    %cst = arith.constant dense<0.000000e+00> : vector<64x32xf32>
    %4 = tpu.matmul %2, %3, %cst {dimension_numbers = #tpu.dot_dimension_numbers<[1], [0], [0], [1], [0, 0, 1, 1], [], []>} : vector<64x32xbf16>, vector<32x32xbf16>, vector<64x32xf32> -> vector<64x32xf32>
    %c0_4 = arith.constant 0 : index
    %c0_5 = arith.constant 0 : index
    %5 = vector.load %arg3[%c0_4, %c0_5] : memref<1x32xf32, #tpu.memory_space<vmem>>, vector<1x32xf32>
    %6 = vector.broadcast %5 : vector<1x32xf32> to vector<64x32xf32>
    %7 = arith.addf %4, %6 : vector<64x32xf32>
    %cst_6 = arith.constant 0.000000e+00 : f32
    %8 = vector.broadcast %cst_6 : f32 to vector<64x32xf32>
    %9 = arith.cmpf ogt, %7, %8 : vector<64x32xf32>
    %cst_7 = arith.constant 0.00999999977 : f32
    %10 = vector.broadcast %cst_7 : f32 to vector<64x32xf32>
    %11 = arith.mulf %10, %7 : vector<64x32xf32>
    %12 = arith.select %9, %7, %11 : vector<64x32xi1>, vector<64x32xf32>
    %13 = arith.truncf %12 : vector<64x32xf32> to vector<64x32xbf16>
    %14 = vector.shape_cast %13 : vector<64x32xbf16> to vector<1x64x32xbf16>
    %c0_8 = arith.constant 0 : index
    %c0_9 = arith.constant 0 : index
    %15 = vector.load %arg4[%c0_8, %c0_9] : memref<8x64xbf16, #tpu.memory_space<vmem>>, vector<8x64xbf16>
    %16 = vector.shape_cast %15 : vector<8x64xbf16> to vector<1x8x64xbf16>
    "tpu.trace_start"() <{level = 10 : i32, message = "bst,btn->bsn"}> : () -> ()
    %cst_10 = arith.constant dense<0.000000e+00> : vector<1x8x32xf32>
    %17 = tpu.matmul %16, %14, %cst_10 {dimension_numbers = #tpu.dot_dimension_numbers<[2], [1], [1], [2], [0, 0, 0, 1, 1, 2], [0], [0]>} : vector<1x8x64xbf16>, vector<1x64x32xbf16>, vector<1x8x32xf32> -> vector<1x8x32xf32>
    "tpu.trace_stop"() : () -> ()
    %c0_11 = arith.constant 0 : index
    %c0_12 = arith.constant 0 : index
    %18 = vector.load %arg5[%c0_11, %c0_12] : memref<8x1xf32, #tpu.memory_space<vmem>>, vector<8x1xf32>
    %19 = vector.shape_cast %18 : vector<8x1xf32> to vector<1x8x1xf32>
    %20 = vector.broadcast %19 : vector<1x8x1xf32> to vector<1x8x32xf32>
    %21 = arith.addf %17, %20 : vector<1x8x32xf32>
    %cst_13 = arith.constant 0.000000e+00 : f32
    %22 = vector.broadcast %cst_13 : f32 to vector<1x8x32xf32>
    %23 = arith.maximumf %21, %22 : vector<1x8x32xf32>
    %c0_14 = arith.constant 0 : index
    %c0_15 = arith.constant 0 : index
    %c0_16 = arith.constant 0 : index
    %24 = vector.load %arg6[%c0_14, %c0_15, %c0_16] : memref<1x8x32xf32, #tpu.memory_space<vmem>>, vector<1x8x32xf32>
    tpu.vector_store %arg6[%c0_14, %c0_15, %c0_16], %23 {strides = array<i32>} : memref<1x8x32xf32, #tpu.memory_space<vmem>>, vector<1x8x32xf32>,
    return
  }
  func.func @transform_0(%arg0: i32) -> (i32, i32, i32) {
    %c0_i32 = arith.constant 0 : i32
    %c0_i32_0 = arith.constant 0 : i32
    %c0_i32_1 = arith.constant 0 : i32
    return %arg0, %c0_i32, %c0_i32_0 : i32, i32, i32
  }
  func.func @transform_1(%arg0: i32) -> (i32, i32) {
    %c0_i32 = arith.constant 0 : i32
    %c0_i32_0 = arith.constant 0 : i32
    %c0_i32_1 = arith.constant 0 : i32
    return %c0_i32, %c0_i32_0 : i32, i32
  }
  func.func @transform_2(%arg0: i32) -> (i32, i32) {
    %c0_i32 = arith.constant 0 : i32
    %c0_i32_0 = arith.constant 0 : i32
    %c0_i32_1 = arith.constant 0 : i32
    return %c0_i32, %c0_i32_0 : i32, i32
  }
  func.func @transform_3(%arg0: i32) -> (i32, i32) {
    %c0_i32 = arith.constant 0 : i32
    %c0_i32_0 = arith.constant 0 : i32
    %c0_i32_1 = arith.constant 0 : i32
    return %c0_i32, %c0_i32_0 : i32, i32
  }
  func.func @transform_4(%arg0: i32) -> (i32, i32) {
    %c0_i32 = arith.constant 0 : i32
    %c0_i32_0 = arith.constant 0 : i32
    %c0_i32_1 = arith.constant 0 : i32
    return %c0_i32, %c0_i32_0 : i32, i32
  }
  func.func @transform_5(%arg0: i32) -> (i32, i32, i32) {
    %c0_i32 = arith.constant 0 : i32
    %c0_i32_0 = arith.constant 0 : i32
    %c0_i32_1 = arith.constant 0 : i32
    return %arg0, %c0_i32, %c0_i32_0 : i32, i32, i32
  }
}

</mosaic_0001>

<llo_original>
// kernel: tpu_custom_call.1
$region0: #{tpu_custom_call.1}
  #allocation0 [shape = 'u32[]', space=smem, size = 0x4, offset = 0x4, fixed_abs, tag = 'smem constant byte address 0x4 - core index']
  #allocation1 [shape = 'u32[72,128]{1,0:T(1,128)}', space=vmem, size = 0x9000, scoped, tag = 'internal scratch']
  %s0 = inlined_call_operand.vmem [shape: f32[2,64,32], index: 0, kind: input, shape index: {}]
  %s1 = inlined_call_operand.vmem [shape: bf16[32,32], index: 1, kind: input, shape index: {}]
  %s2 = inlined_call_operand.vmem [shape: f32[1,32], index: 2, kind: input, shape index: {}]
  %s3 = inlined_call_operand.vmem [shape: bf16[8,64], index: 3, kind: input, shape index: {}]
  %s4 = inlined_call_operand.vmem [shape: f32[8,1], index: 4, kind: input, shape index: {}]
  %s5 = inlined_call_operand.hbm [shape: f32[2,8,32], index: 5, kind: output, shape index: {}]
  %s6 = sld [smem:[#allocation0]]
  $region53: #{tpu_custom_call.1} parent=0
    _
  %s8 = ssub.s32 1, %s6
  %s9 = scalar_select 0, %s8, %s6
  $region1: #{tpu_custom_call.1} parent=0
    #allocation2 [shape = 'u8[8192]{0}', space=vmem, size = 0x2000, scoped, tag = 'output window, operand 0']
    #allocation3 [shape = 's32[2]{0}', space=sflag, size = 0x8, scoped, tag = 'scoped memory for tpu_custom_call.1']
    %10 = vsyncpa [#allocation3], 0
    %s11 = scalar_lea.sflag [#allocation3], 1
    %12 = vsyncpa %s11, 0
    loop: start=0, step=1, limit=4
    $region2: #{tpu_custom_call.1} parent=1 // loop_pre_header
      _
    $region3: #{tpu_custom_call.1} parent=1 // loop_header
      %s14 = sphi 0, %s18
      %p15 = scmp.ge.s32.totalorder %s14, 4
      %s24 = sphi 0, %s26
      %s27 = sphi 0, %s24
      %s28 = sphi 0, %s27
      %s44 = sphi 0, %s28
      %s48 = sphi 0, %s48
      %s50 = sphi 0, %s48
      %s51 = sphi 0, %s50
      %s65 = sphi 0, %s51
      %s69 = sphi 0, %s69
      %s71 = sphi 0, %s69
      %s72 = sphi 0, %s71
      %s86 = sphi 0, %s72
      %s90 = sphi 0, %s90
      %s92 = sphi 0, %s90
      %s93 = sphi 0, %s92
      %s107 = sphi 0, %s93
      %s111 = sphi 0, %s111
      %s113 = sphi 0, %s111
      %s114 = sphi 0, %s113
      %s128 = sphi 0, %s114
      %s134 = sphi 0, %s136
      %s137 = sphi 0, %s134
      %s138 = sphi 0, %s137
      %s154 = sphi 0, %s138
    $region4: #{tpu_custom_call.1} parent=1 // loop_header_branch
      %17 = sbr.rel (%p15) target = $region8
    $region5: #{tpu_custom_call.1} parent=1 // loop_body
      %s19 = ssub.s32 %s14, 1
      %s20 = ssub.s32 %s14, 2
      %s21 = sadd.s32 %s14, 1
      %s22 = ssub.s32 %s14, %s21
      %p23 = scmp.eq.s32.totalorder %s22, 0
      %s25 = sadd.s32 %s24, 1
      %s26 = scalar_select %p23, %s24, %s25
      %p29 = pneg %p23
      %p30 = scmp.eq.s32.totalorder %s14, 1
      %p31 = por %p29, %p30
      %p32 = scmp.ne.s32.totalorder %s24, %s27
      %p33 = scmp.eq.s32.totalorder %s14, 0
      %p34 = por %p32, %p33
      %p35 = scmp.ne.s32.totalorder %s24, %s27
      %p36 = scmp.eq.s32.totalorder %s19, 1
      %p37 = por %p35, %p36
      %p38 = scmp.ne.s32.totalorder %s27, %s28
      %p39 = scmp.eq.s32.totalorder %s19, 0
      %p40 = por %p38, %p39
      %p41 = scmp.ne.s32.totalorder %s27, %s28
      %p42 = scmp.eq.s32.totalorder %s20, 1
      %p43 = por %p41, %p42
      %p45 = scmp.ne.s32.totalorder %s28, %s44
      %p46 = scmp.eq.s32.totalorder %s20, 0
      %p47 = por %p45, %p46
      %s49 = sadd.s32 %s48, 1
      %p52 = scmp.eq.s32.totalorder %s14, 1
      %p53 = scmp.ne.s32.totalorder %s48, %s50
      %p54 = scmp.eq.s32.totalorder %s14, 0
      %p55 = por %p53, %p54
      %p56 = scmp.ne.s32.totalorder %s48, %s50
      %p57 = scmp.eq.s32.totalorder %s19, 1
      %p58 = por %p56, %p57
      %p59 = scmp.ne.s32.totalorder %s50, %s51
      %p60 = scmp.eq.s32.totalorder %s19, 0
      %p61 = por %p59, %p60
      %p62 = scmp.ne.s32.totalorder %s50, %s51
      %p63 = scmp.eq.s32.totalorder %s20, 1
      %p64 = por %p62, %p63
      %p66 = scmp.ne.s32.totalorder %s51, %s65
      %p67 = scmp.eq.s32.totalorder %s20, 0
      %p68 = por %p66, %p67
      %s70 = sadd.s32 %s69, 1
      %p73 = scmp.eq.s32.totalorder %s14, 1
      %p74 = scmp.ne.s32.totalorder %s69, %s71
      %p75 = scmp.eq.s32.totalorder %s14, 0
      %p76 = por %p74, %p75
      %p77 = scmp.ne.s32.totalorder %s69, %s71
      %p78 = scmp.eq.s32.totalorder %s19, 1
      %p79 = por %p77, %p78
      %p80 = scmp.ne.s32.totalorder %s71, %s72
      %p81 = scmp.eq.s32.totalorder %s19, 0
      %p82 = por %p80, %p81
      %p83 = scmp.ne.s32.totalorder %s71, %s72
      %p84 = scmp.eq.s32.totalorder %s20, 1
      %p85 = por %p83, %p84
      %p87 = scmp.ne.s32.totalorder %s72, %s86
      %p88 = scmp.eq.s32.totalorder %s20, 0
      %p89 = por %p87, %p88
      %s91 = sadd.s32 %s90, 1
      %p94 = scmp.eq.s32.totalorder %s14, 1
      %p95 = scmp.ne.s32.totalorder %s90, %s92
      %p96 = scmp.eq.s32.totalorder %s14, 0
      %p97 = por %p95, %p96
      %p98 = scmp.ne.s32.totalorder %s90, %s92
      %p99 = scmp.eq.s32.totalorder %s19, 1
      %p100 = por %p98, %p99
      %p101 = scmp.ne.s32.totalorder %s92, %s93
      %p102 = scmp.eq.s32.totalorder %s19, 0
      %p103 = por %p101, %p102
      %p104 = scmp.ne.s32.totalorder %s92, %s93
      %p105 = scmp.eq.s32.totalorder %s20, 1
      %p106 = por %p104, %p105
      %p108 = scmp.ne.s32.totalorder %s93, %s107
      %p109 = scmp.eq.s32.totalorder %s20, 0
      %p110 = por %p108, %p109
      %s112 = sadd.s32 %s111, 1
      %p115 = scmp.eq.s32.totalorder %s14, 1
      %p116 = scmp.ne.s32.totalorder %s111, %s113
      %p117 = scmp.eq.s32.totalorder %s14, 0
      %p118 = por %p116, %p117
      %p119 = scmp.ne.s32.totalorder %s111, %s113
      %p120 = scmp.eq.s32.totalorder %s19, 1
      %p121 = por %p119, %p120
      %p122 = scmp.ne.s32.totalorder %s113, %s114
      %p123 = scmp.eq.s32.totalorder %s19, 0
      %p124 = por %p122, %p123
      %p125 = scmp.ne.s32.totalorder %s113, %s114
      %p126 = scmp.eq.s32.totalorder %s20, 1
      %p127 = por %p125, %p126
      %p129 = scmp.ne.s32.totalorder %s114, %s128
      %p130 = scmp.eq.s32.totalorder %s20, 0
      %p131 = por %p129, %p130
      %s132 = ssub.s32 %s14, %s21
      %p133 = scmp.eq.s32.totalorder %s132, 0
      %s135 = sadd.s32 %s134, 1
      %s136 = scalar_select %p133, %s134, %s135
      %p139 = pneg %p133
      %p140 = scmp.eq.s32.totalorder %s14, 1
      %p141 = por %p139, %p140
      %p142 = scmp.ne.s32.totalorder %s134, %s137
      %p143 = scmp.eq.s32.totalorder %s14, 0
      %p144 = por %p142, %p143
      %p145 = scmp.ne.s32.totalorder %s134, %s137
      %p146 = scmp.eq.s32.totalorder %s19, 1
      %p147 = por %p145, %p146
      %p148 = scmp.ne.s32.totalorder %s137, %s138
      %p149 = scmp.eq.s32.totalorder %s19, 0
      %p150 = por %p148, %p149
      %p151 = scmp.ne.s32.totalorder %s137, %s138
      %p152 = scmp.eq.s32.totalorder %s20, 1
      %p153 = por %p151, %p152
      %p155 = scmp.ne.s32.totalorder %s138, %s154
      %p156 = scmp.eq.s32.totalorder %s20, 0
      %p157 = por %p155, %p156
      %p158 = scmp.le.s32.totalorder 1, %s14
      %p159 = scmp.lt.s32.totalorder %s14, 3
      %p160 = pnand %p158, %p159
      %p161 = pneg %p160
      // Predicated region
      $region9: #{tpu_custom_call.1} parent=5 // pred_check
        _
      $region10: #{tpu_custom_call.1} parent=5 // pred_check_branch
        %163 = sbr.rel (%p160) target = $region12
      $region11: #{tpu_custom_call.1} parent=5 // pred_region
        %s164 = ssub.s32 %s14, 1
        // Predicated region
        $region13: #{tpu_custom_call.1} parent=11 // pred_check
          %p165 = pneg %p61
        $region14: #{tpu_custom_call.1} parent=11 // pred_check_branch
          %167 = sbr.rel (%p165) target = $region16
        $region15: #{tpu_custom_call.1} parent=11 // pred_region
          _
        $region16: #{tpu_custom_call.1} parent=11 // pred_fallthru
          _
        // Predicated region
        $region17: #{tpu_custom_call.1} parent=11 // pred_check
          %p168 = pneg %p82
        $region18: #{tpu_custom_call.1} parent=11 // pred_check_branch
          %170 = sbr.rel (%p168) target = $region20
        $region19: #{tpu_custom_call.1} parent=11 // pred_region
          _
        $region20: #{tpu_custom_call.1} parent=11 // pred_fallthru
          _
        // Predicated region
        $region21: #{tpu_custom_call.1} parent=11 // pred_check
          %p171 = pneg %p103
        $region22: #{tpu_custom_call.1} parent=11 // pred_check_branch
          %173 = sbr.rel (%p171) target = $region24
        $region23: #{tpu_custom_call.1} parent=11 // pred_region
          _
        $region24: #{tpu_custom_call.1} parent=11 // pred_fallthru
          _
        // Predicated region
        $region25: #{tpu_custom_call.1} parent=11 // pred_check
          %p174 = pneg %p124
        $region26: #{tpu_custom_call.1} parent=11 // pred_check_branch
          %176 = sbr.rel (%p174) target = $region28
        $region27: #{tpu_custom_call.1} parent=11 // pred_region
          _
        $region28: #{tpu_custom_call.1} parent=11 // pred_fallthru
          _
      $region12: #{tpu_custom_call.1} parent=5 // pred_fallthru
        _
      %p177 = scmp.lt.s32.totalorder %s14, 2
      // Predicated region
      $region29: #{tpu_custom_call.1} parent=5 // pred_check
        %p178 = pneg %p177
      $region30: #{tpu_custom_call.1} parent=5 // pred_check_branch
        %180 = sbr.rel (%p178) target = $region32
      $region31: #{tpu_custom_call.1} parent=5 // pred_region
        // Predicated region
        $region33: #{tpu_custom_call.1} parent=31 // pred_check
          %p181 = pneg %p34
        $region34: #{tpu_custom_call.1} parent=31 // pred_check_branch
          %183 = sbr.rel (%p181) target = $region36
        $region35: #{tpu_custom_call.1} parent=31 // pred_region
          %p184 = scmp.lt.s32.totalorder %s14, 1
          %s185 = scalar_select %p184, %s14, 1
          %s186 = smul.addr %s185, 8
          %s187 = smul.addr %s186, 8
          %s188 = scalar_lea.vmem %s0, %s187
        $region36: #{tpu_custom_call.1} parent=31 // pred_fallthru
          _
      $region32: #{tpu_custom_call.1} parent=5 // pred_fallthru
        _
      %p189 = scmp.le.s32.totalorder 1, %s14
      %p190 = scmp.lt.s32.totalorder %s14, 3
      %p191 = pnand %p189, %p190
      %p192 = pneg %p191
      // Predicated region
      $region37: #{tpu_custom_call.1} parent=5 // pred_check
        _
      $region38: #{tpu_custom_call.1} parent=5 // pred_check_branch
        %194 = sbr.rel (%p191) target = $region40
      $region39: #{tpu_custom_call.1} parent=5 // pred_region
        %s195 = ssub.s32 %s14, 1
        %p196 = scmp.lt.s32.totalorder %s19, 1
        %s197 = scalar_select %p196, %s19, 1
        %s198 = smul.addr %s197, 8
        %s199 = smul.addr %s198, 8
        %s200 = scalar_lea.vmem %s0, %s199
        %p201 = pneg %p40
        %p202 = pneg %p37
        %p203 = pneg %p61
        %p204 = pneg %p58
        %p205 = pneg %p82
        %p206 = pneg %p79
        %p207 = pneg %p103
        %p208 = pneg %p100
        %p209 = pneg %p124
        %p210 = pneg %p121
        %p211 = pneg %p150
        %p212 = pneg %p147
        %s213 = sand.u32 %s137, 1
        %s214 = scalar_lea.sflag [#allocation3], %s213
        %s215 = sand.u32 %s137, 1
        %s216 = smul.addr %s215, 8
        %s217 = scalar_lea.vmem [#allocation2], %s216
        %p218 = scmp.lt.s32.totalorder %s19, 1
        %s219 = scalar_select %p218, %s19, 1
        %s220 = smul.addr %s219, 8
        %s221 = smul.addr %s220, 8
        %s222 = scalar_lea.vmem %s0, %s221
        %v224 = vld [vmem:[%s222] sm:$0xff]
        %v225 = vld [vmem:[%s222 + $0x8] sm:$0xff]
        %v226 = vld [vmem:[%s222 + $0x10] sm:$0xff]
        %v227 = vld [vmem:[%s222 + $0x18] sm:$0xff]
        %v228 = vld [vmem:[%s222 + $0x20] sm:$0xff]
        %v229 = vld [vmem:[%s222 + $0x28] sm:$0xff]
        %v230 = vld [vmem:[%s222 + $0x30] sm:$0xff]
        %v231 = vld [vmem:[%s222 + $0x38] sm:$0xff]
        %v232 = vpack.c.bf16 %v224, %v224
        %v233 = vpack.c.bf16 %v225, %v225
        %v234 = vpack.c.bf16 %v226, %v226
        %v235 = vpack.c.bf16 %v227, %v227
        %v236 = vpack.c.bf16 %v228, %v228
        %v237 = vpack.c.bf16 %v229, %v229
        %v238 = vpack.c.bf16 %v230, %v230
        %v239 = vpack.c.bf16 %v231, %v231
        %v240 = vld [vmem:[%s1] sm:$0xf]
        %v241 = vld [vmem:[%s1 + $0x4] sm:$0xf]
        %v242 = vld [vmem:[%s1 + $0x8] sm:$0xf]
        %v243 = vld [vmem:[%s1 + $0xc] sm:$0xf]
        %v244 = vld [vmem:[%s2] sm:$0x1]
        %v246 = vperm.slane %v244, 0
        %v256 = vunpack.c.l.b16 %v232
        %v257 = vunpack.c.l.b16 %v233
        %v258 = vunpack.c.l.b16 %v234
        %v259 = vunpack.c.l.b16 %v235
        %v260 = vunpack.c.l.b16 %v236
        %v261 = vunpack.c.l.b16 %v237
        %v262 = vunpack.c.l.b16 %v238
        %v263 = vunpack.c.l.b16 %v239
        %v264 = vpack.c.b16 %v257, %v256
        %v265 = vpack.c.b16 %v259, %v258
        %v266 = vpack.c.b16 %v261, %v260
        %v267 = vpack.c.b16 %v263, %v262
        %v272 = vunpack.c.l.b16 %v240
        %v273 = vunpack.c.l.b16 %v241
        %v274 = vunpack.c.l.b16 %v242
        %v275 = vunpack.c.l.b16 %v243
        %v276 = vpack.c.b16 %v273, %v272
        %v277 = vpack.c.b16 %v275, %v274
        %vm280 = vcmask 261120
        %v282 = vsel %vm280, %v264, 0
        %v285 = vsel %vm280, %v265, 0
        %v288 = vsel %vm280, %v266, 0
        %v291 = vsel %vm280, %v267, 0
        %293 = vmatpush.bf16.msra.mxu0 0
        %294 = vmatpush.bf16.msra.mxu0 0
        %295 = vmatpush.bf16.msra.mxu0 0
        %296 = vmatpush.bf16.msra.mxu0 0
        %297 = vmatpush.bf16.msra.mxu0 0
        %298 = vmatpush.bf16.msra.mxu0 0
        %299 = vmatpush.bf16.msra.mxu0 %v277
        %300 = vmatpush.bf16.msra.mxu0 %v276
        %301 = vmatmul.bf16.gmra.mxu0 %v282
        %v302 = vpop.f32.mrf.mxu0
        %v303 = vadd.f32 %v246, %v302
        %v304 = vpop.f32.mrf.mxu0
        %v305 = vadd.f32 %v246, %v304
        %306 = vmatmul.bf16.gmra.mxu0 %v285
        %v307 = vpop.f32.mrf.mxu0
        %v308 = vadd.f32 %v246, %v307
        %v309 = vpop.f32.mrf.mxu0
        %v310 = vadd.f32 %v246, %v309
        %311 = vmatmul.bf16.gmra.mxu0 %v288
        %v312 = vpop.f32.mrf.mxu0
        %v313 = vadd.f32 %v246, %v312
        %v314 = vpop.f32.mrf.mxu0
        %v315 = vadd.f32 %v246, %v314
        %316 = vmatmul.bf16.gmra.mxu0 %v291
        %v317 = vpop.f32.mrf.mxu0
        %v318 = vadd.f32 %v246, %v317
        %v319 = vpop.f32.mrf.mxu0
        %v320 = vadd.f32 %v246, %v319
        %321 = vdwg.mxu0
        %vm322 = vcmp.gt.f32.partialorder %v303, 0.0
        %vm323 = vcmp.gt.f32.partialorder %v305, 0.0
        %vm324 = vcmp.gt.f32.partialorder %v308, 0.0
        %vm325 = vcmp.gt.f32.partialorder %v310, 0.0
        %vm326 = vcmp.gt.f32.partialorder %v313, 0.0
        %vm327 = vcmp.gt.f32.partialorder %v315, 0.0
        %vm328 = vcmp.gt.f32.partialorder %v318, 0.0
        %vm329 = vcmp.gt.f32.partialorder %v320, 0.0
        %v330 = vmul.f32 %v303, 0.01
        %v331 = vmul.f32 %v305, 0.01
        %v332 = vmul.f32 %v308, 0.01
        %v333 = vmul.f32 %v310, 0.01
        %v334 = vmul.f32 %v313, 0.01
        %v335 = vmul.f32 %v315, 0.01
        %v336 = vmul.f32 %v318, 0.01
        %v337 = vmul.f32 %v320, 0.01
        %v338 = vsel %vm322, %v303, %v330
        %v339 = vsel %vm323, %v305, %v331
        %v340 = vsel %vm324, %v308, %v332
        %v341 = vsel %vm325, %v310, %v333
        %v342 = vsel %vm326, %v313, %v334
        %v343 = vsel %vm327, %v315, %v335
        %v344 = vsel %vm328, %v318, %v336
        %v345 = vsel %vm329, %v320, %v337
        %v346 = vpack.c.bf16 %v338, %v338
        %v347 = vpack.c.bf16 %v339, %v339
        %v348 = vpack.c.bf16 %v340, %v340
        %v349 = vpack.c.bf16 %v341, %v341
        %v350 = vpack.c.bf16 %v342, %v342
        %v351 = vpack.c.bf16 %v343, %v343
        %v352 = vpack.c.bf16 %v344, %v344
        %v353 = vpack.c.bf16 %v345, %v345
        %v354 = vld [vmem:[%s3] sm:$0xf]
        %v355 = vld [vmem:[%s4] sm:$0xff]
        %357 = vset.pattern.permute.xlu0 0
        %358 = vperm.xlu0 %357, %v355
        %v359 = vpop.permute.xlu0 %358
        %v369 = vunpack.c.l.b16 %v346
        %v370 = vunpack.c.l.b16 %v347
        %v371 = vunpack.c.l.b16 %v348
        %v372 = vunpack.c.l.b16 %v349
        %v373 = vunpack.c.l.b16 %v350
        %v374 = vunpack.c.l.b16 %v351
        %v375 = vunpack.c.l.b16 %v352
        %v376 = vunpack.c.l.b16 %v353
        %v377 = vpack.c.b16 %v370, %v369
        %v378 = vpack.c.b16 %v372, %v371
        %v379 = vpack.c.b16 %v374, %v373
        %v380 = vpack.c.b16 %v376, %v375
        %vm385 = vcmask 523264
        %v387 = vsel %vm385, %v354, 0
        %389 = vmatpush.bf16.msra.mxu0 0
        %390 = vmatpush.bf16.msra.mxu0 0
        %391 = vmatpush.bf16.msra.mxu0 0
        %392 = vmatpush.bf16.msra.mxu0 0
        %393 = vmatpush.bf16.msra.mxu0 %v380
        %394 = vmatpush.bf16.msra.mxu0 %v379
        %395 = vmatpush.bf16.msra.mxu0 %v378
        %396 = vmatpush.bf16.msra.mxu0 %v377
        %397 = vmatmul.bf16.gmra.mxu0 %v387
        %v398 = vpop.f32.mrf.mxu0
        %v399 = vadd.f32 %v359, %v398
        %v400 = vpop.f32.mrf.mxu0
        %401 = vdwg.mxu0
        %v402 = vmax.f32 %v399, 0.0
        %403 = vst.msk [vmem:[%s217] sm:$0xff] %vm280, %v402
        %s404 = sand.u32 %s137, 1
        %s405 = scalar_lea.sflag [#allocation3], %s404
        %s406 = sand.u32 %s137, 1
        %s407 = smul.addr %s406, 8
        %s408 = scalar_lea.vmem [#allocation2], %s407
        // Predicated region
        $region41: #{tpu_custom_call.1} parent=39 // pred_check
          %p409 = pneg %p147
        $region42: #{tpu_custom_call.1} parent=39 // pred_check_branch
          %411 = sbr.rel (%p409) target = $region44
        $region43: #{tpu_custom_call.1} parent=39 // pred_region
          %413 = vsyncadd %s405, 0
          %s414 = smul.addr %s19, 8
          %s415 = scalar_lea.hbm %s5, %s414
          %s417 = sshll.u32 %s408, 4
          %s418 = int_to_ptr.vmem [resolvable:$true] %s417
          %s419 = sshll.u32 %s415, 4
          %s420 = int_to_ptr.hbm [resolvable:$true] %s419
          %422 = dma.vmem_to_hbm [thread:$0]  %s418, 128, %s420, %s405
        $region44: #{tpu_custom_call.1} parent=39 // pred_fallthru
          _
      $region40: #{tpu_custom_call.1} parent=5 // pred_fallthru
        _
      %p423 = scmp.le.s32.totalorder 2, %s14
      // Predicated region
      $region45: #{tpu_custom_call.1} parent=5 // pred_check
        %p424 = pneg %p423
      $region46: #{tpu_custom_call.1} parent=5 // pred_check_branch
        %426 = sbr.rel (%p424) target = $region48
      $region47: #{tpu_custom_call.1} parent=5 // pred_region
        %s427 = ssub.s32 %s14, 2
        // Predicated region
        $region49: #{tpu_custom_call.1} parent=47 // pred_check
          %p428 = pneg %p153
        $region50: #{tpu_custom_call.1} parent=47 // pred_check_branch
          %430 = sbr.rel (%p428) target = $region52
        $region51: #{tpu_custom_call.1} parent=47 // pred_region
          %s431 = sand.u32 %s138, 1
          %s432 = scalar_lea.sflag [#allocation3], %s431
          %s433 = sand.u32 %s138, 1
          %s434 = smul.addr %s433, 8
          %s435 = scalar_lea.vmem [#allocation2], %s434
          %437 = dma.done %s432, 128
        $region52: #{tpu_custom_call.1} parent=47 // pred_fallthru
          _
      $region48: #{tpu_custom_call.1} parent=5 // pred_fallthru
        _
    $region6: #{tpu_custom_call.1} parent=1 // loop_footer
      %s18 = sadd.s32 1, %s14
    $region7: #{tpu_custom_call.1} parent=1 // loop_footer_branch
      %13 = sbr.rel target = $region3
    $region8: #{tpu_custom_call.1} parent=1 // loop_exit
      _
    %438 = vsyncpa [#allocation3], 1
    %s439 = scalar_lea.sflag [#allocation3], 1
    %440 = vsyncpa %s439, 1

</llo_original>
